<compile_context>
chip_gen: v7x
topology: tpu7x:2x2x1
jax: 0.10.0
libtpu: 0.0.40
codegen_flags: <defaults>
</compile_context>

<pallas_src>
import functools

import jax
import jax.numpy as jnp
from jax.experimental import pallas as pl
from jax.experimental.pallas import tpu as pltpu

# torch.finfo(torch.float32).eps -- observer's eps
_F32_EPS = float(jnp.finfo(jnp.float32).eps)
_LANE = 128


def _cdiv(a, b):
    return -(-a // b)


def _quant_range(bits, dtype: str):
    """get_quantization_range_from_bit_precision (qint8 / quint8 / 1.5-bit)."""
    if bits == 1.5:
        return -1, 1
    if dtype == "qint8":
        return -(2 ** (bits - 1)) + 1, 2 ** (bits - 1) - 1
    if dtype == "quint8":
        return 0, 2 ** bits - 1
    raise ValueError(f"Unrecognized dtype {dtype}")


def _vmem_budget_bytes():
    """Generation-aware scoped-VMEM budget (0.75x physical, 48 MiB fallback)."""
    cap = None
    try:
        info = pltpu.get_tpu_info()
        cap = getattr(info, "vmem_capacity_bytes", None)
    except Exception:
        cap = None
    if not cap:
        cap = 64 * 1024 * 1024  # conservative (v7x-sized) fallback
    return int(cap) * 3 // 4


# ---------------------------------------------------------------------------
# Shared q-param / fake-quant math (used both in-kernel and in the wrapper)
# ---------------------------------------------------------------------------
def _qparams_from_minmax(mn, mx, *, quant_min, quant_max, symmetric, is_signed):
    """MinMaxObserver.calculate_qparams semantics (customized qrange)."""
    min_neg = jnp.minimum(mn, jnp.float32(0.0))
    max_pos = jnp.maximum(mx, jnp.float32(0.0))
    qmin_f = jnp.float32(quant_min)
    qmax_f = jnp.float32(quant_max)
    if symmetric:
        max_pos = jnp.maximum(-min_neg, max_pos)
        scale = jnp.maximum(max_pos / ((qmax_f - qmin_f) * 0.5), _F32_EPS)
        if is_signed:
            zp = jnp.float32(0.0)
        else:
            # has_customized_qrange branch: zp = (qmin + qmax) // 2.
            zp = jnp.float32((quant_min + quant_max) // 2)
    else:
        scale = jnp.maximum((max_pos - min_neg) / (qmax_f - qmin_f), _F32_EPS)
        zp = jnp.clip(qmin_f - jnp.round(min_neg / scale), qmin_f, qmax_f)
    return scale, zp


def _apply_fake_quant(x, scale, zp, inv_scale, quant_min, quant_max):
    # torch's fake_quantize_per_tensor_affine uses inv_scale multiplication and
    # nearbyint (round-half-to-even), which jnp.round matches.
    q = jnp.clip(jnp.round(x * inv_scale + zp),
                 jnp.float32(quant_min), jnp.float32(quant_max))
    return (q - zp) * scale


# ---------------------------------------------------------------------------
# Kernel A: fused single-pass (tensor fully resident in VMEM)
# ---------------------------------------------------------------------------
def _fused_quant_kernel(x_ref, o_ref, *, quant_min, quant_max, symmetric,
                        is_signed):
    x_native = x_ref[...]
    # min/max reduced in the native dtype (monotone), scalar cast to f32.
    mn = jnp.min(x_native).astype(jnp.float32)
    mx = jnp.max(x_native).astype(jnp.float32)
    scale, zp = _qparams_from_minmax(
        mn, mx, quant_min=quant_min, quant_max=quant_max,
        symmetric=symmetric, is_signed=is_signed)
    inv_scale = 1.0 / scale   # exact divide (do NOT use approx reciprocal)
    x = x_native.astype(jnp.float32)
    o_ref[...] = _apply_fake_quant(
        x, scale, zp, inv_scale, quant_min, quant_max).astype(o_ref.dtype)


# ---------------------------------------------------------------------------
# Kernel B1: per-block partial min/max (megacore-parallel observer pass)
# ---------------------------------------------------------------------------
def _minmax_partial_kernel(x_ref, min_ref, max_ref):
    tile = x_ref[...]  # native dtype: no block-sized f32 temp
    mn = jnp.min(tile).astype(jnp.float32)
    mx = jnp.max(tile).astype(jnp.float32)
    # Each grid step writes its own (8, 128) output block -> fully parallel,
    # no accumulator serialization. Final reduce happens in the wrapper.
    min_ref[...] = jnp.full((8, _LANE), mn, dtype=jnp.float32)
    max_ref[...] = jnp.full((8, _LANE), mx, dtype=jnp.float32)


# ---------------------------------------------------------------------------
# Kernel B2: fake quantize; (scale, zp, 1/scale) arrive via scalar prefetch
# ---------------------------------------------------------------------------
def _fake_quant_kernel(params_ref, x_ref, o_ref, *, quant_min, quant_max):
    scale = params_ref[0]       # SMEM scalar path
    zp = params_ref[1]
    inv_scale = params_ref[2]
    x = x_ref[...].astype(jnp.float32)
    o_ref[...] = _apply_fake_quant(
        x, scale, zp, inv_scale, quant_min, quant_max).astype(o_ref.dtype)


# ---------------------------------------------------------------------------
# Layout planner: lane-dense working shape + tile rows (+ optional padding)
# ---------------------------------------------------------------------------
def _plan_layout(total, itemsize, target_block_bytes, two_pass):
    """Return (m_pad, lane_width, tile_rows, pad_elems)."""
    pack = max(8, 32 // itemsize)          # 8 f32, 16 bf16, 32 int8 sublanes
    # Lane width: prefer an exact divisor of `total` (no pad copy needed).
    lane_width = None
    for cand in (2048, 1024, 512, 256, _LANE):
        if total % cand == 0:
            lane_width = cand
            break
    if lane_width is None:
        lane_width = 512 if total >= 512 else _LANE
    n_rows = _cdiv(total, lane_width)

    if not two_pass:
        # Single full-array block: any (m, lane_width) is legal.
        m_pad = n_rows
        return m_pad, lane_width, m_pad, m_pad * lane_width - total

    row_bytes = lane_width * itemsize
    tgt_rows = max(pack, (target_block_bytes // row_bytes) // pack * pack)

    if total % lane_width == 0 and n_rows % pack == 0:
        # Look for an exact divisor that is not pathologically small.
        min_ok = max(pack, (tgt_rows // 4) // pack * pack)
        t = (min(n_rows, tgt_rows) // pack) * pack
        while t >= min_ok:
            if n_rows % t == 0:
                return n_rows, lane_width, t, 0
            t -= pack

    # Otherwise pad rows so the grid covers full, equally sized blocks only
    # (never falls back to a whole-tensor block).
    g = max(1, _cdiv(n_rows, tgt_rows))
    tile_rows = _cdiv(_cdiv(n_rows, g), pack) * pack
    m_pad = g * tile_rows
    return m_pad, lane_width, tile_rows, m_pad * lane_width - total


# ---------------------------------------------------------------------------
# Wrapper: WeightQuantizer.forward (eval mode, apply_quant / iterative_quant)
# ---------------------------------------------------------------------------
def weight_quantizer_forward(w, *, bit_precision=8, dtype="qint8",
                             method="per_tensor_symmetric",
                             target_block_bytes=None,
                             fused_max_bytes=None,
                             force_two_pass=False):
    """Equivalent of WeightQuantizer(bits, dtype, method) applied to weight `w`."""
    assert method in ("per_tensor", "per_tensor_symmetric")
    quant_min, quant_max = _quant_range(bit_precision, dtype)
    symmetric = method == "per_tensor_symmetric"
    is_signed = dtype == "qint8"

    budget = _vmem_budget_bytes()
    if fused_max_bytes is None:
        fused_max_bytes = budget // 12      # ~8 MiB on 128 MiB parts, ~4 MiB on v7x
    if target_block_bytes is None:
        target_block_bytes = budget // 10   # ~9.6 MiB / ~4.8 MiB blocks

    orig_shape = w.shape
    flat = w.reshape(-1)
    total = int(flat.shape[0])
    itemsize = jnp.dtype(w.dtype).itemsize
    tensor_bytes = total * itemsize

    two_pass = force_two_pass or tensor_bytes > fused_max_bytes
    m_pad, lane_width, tile_rows, pad_elems = _plan_layout(
        total, itemsize, target_block_bytes, two_pass)

    if pad_elems:
        # Edge padding repeats an existing element -> per-tensor min/max and
        # hence scale/zp are unchanged; padded outputs are sliced off below.
        flat = jnp.pad(flat, (0, pad_elems), mode="edge")
    w2 = flat.reshape(m_pad, lane_width)
    padded_bytes = m_pad * lane_width * itemsize

    if not two_pass:
        # ---------------- fused single-pass path (1 read + 1 write) ---------
        kernel = functools.partial(
            _fused_quant_kernel, quant_min=quant_min, quant_max=quant_max,
            symmetric=symmetric, is_signed=is_signed)
        out2 = pl.pallas_call(
            kernel,
            out_shape=jax.ShapeDtypeStruct((m_pad, lane_width), w2.dtype),
            grid_spec=pltpu.PrefetchScalarGridSpec(
                num_scalar_prefetch=0,
                grid=(1,),
                in_specs=[pl.BlockSpec((m_pad, lane_width), lambda i: (0, 0))],
                out_specs=pl.BlockSpec((m_pad, lane_width), lambda i: (0, 0)),
            ),
            compiler_params=pltpu.CompilerParams(
                dimension_semantics=("arbitrary",),
                # budget double-buffering + in-kernel f32 temporaries
                vmem_limit_bytes=int(min(budget,
                                         max(16 << 20,
                                             8 * padded_bytes + (4 << 20))))),
            cost_estimate=pl.CostEstimate(
                flops=8 * m_pad * lane_width, transcendentals=0,
                bytes_accessed=2 * padded_bytes),
        )(w2)
    else:
        # ---------------- two-pass path for large tensors -------------------
        grid = (m_pad // tile_rows,)
        g = grid[0]
        block_bytes = tile_rows * lane_width * itemsize

        # --- pass 1: observer (per-block partial min/max, parallel grid) ---
        pmin, pmax = pl.pallas_call(
            _minmax_partial_kernel,
            out_shape=(jax.ShapeDtypeStruct((g * 8, _LANE), jnp.float32),
                       jax.ShapeDtypeStruct((g * 8, _LANE), jnp.float32)),
            grid_spec=pltpu.PrefetchScalarGridSpec(
                num_scalar_prefetch=0,
                grid=grid,
                in_specs=[pl.BlockSpec((tile_rows, lane_width),
                                       lambda i: (i, 0))],
                out_specs=(pl.BlockSpec((8, _LANE), lambda i: (i, 0)),
                           pl.BlockSpec((8, _LANE), lambda i: (i, 0))),
            ),
            compiler_params=pltpu.CompilerParams(
                dimension_semantics=("parallel",),
                vmem_limit_bytes=int(min(budget,
                                         max(16 << 20,
                                             4 * block_bytes + (4 << 20))))),
            cost_estimate=pl.CostEstimate(
                flops=2 * m_pad * lane_width, transcendentals=0,
                bytes_accessed=padded_bytes),
        )(w2)

        w_min = jnp.min(pmin)
        w_max = jnp.max(pmax)

        # --- q-params computed once in the wrapper (tiny scalar XLA ops) ---
        scale, zp = _qparams_from_minmax(
            w_min, w_max, quant_min=quant_min, quant_max=quant_max,
            symmetric=symmetric, is_signed=is_signed)
        inv_scale = 1.0 / scale   # exact divide, matches torch fake_quantize
        params = jnp.stack([scale, zp, inv_scale]).astype(jnp.float32)  # (3,)

        # --- pass 2: fake quantize (scalar-prefetched params, hot loop is
        #             mul/add/round/clip/mul only on lane-dense tiles) -------
        kernel = functools.partial(
            _fake_quant_kernel, quant_min=quant_min, quant_max=quant_max)
        out2 = pl.pallas_call(
            kernel,
            out_shape=jax.ShapeDtypeStruct((m_pad, lane_width), w2.dtype),
            grid_spec=pltpu.PrefetchScalarGridSpec(
                num_scalar_prefetch=1,
                grid=grid,
                in_specs=[pl.BlockSpec((tile_rows, lane_width),
                                       lambda i, p: (i, 0))],
                out_specs=pl.BlockSpec((tile_rows, lane_width),
                                       lambda i, p: (i, 0)),
            ),
            compiler_params=pltpu.CompilerParams(
                dimension_semantics=("parallel",),
                vmem_limit_bytes=int(min(budget,
                                         max(16 << 20,
                                             8 * block_bytes + (4 << 20))))),
            cost_estimate=pl.CostEstimate(
                flops=6 * m_pad * lane_width, transcendentals=0,
                bytes_accessed=2 * padded_bytes),
        )(params, w2)

    out_flat = out2.reshape(-1)
    if pad_elems:
        out_flat = out_flat[:total]
    return out_flat.reshape(orig_shape)


# ---------------------------------------------------------------------------
# Pure-JAX reference for sanity checking
# ---------------------------------------------------------------------------
def _reference(w, *, bit_precision=8, dtype="qint8",
               method="per_tensor_symmetric"):
    quant_min, quant_max = _quant_range(bit_precision, dtype)
    symmetric = method == "per_tensor_symmetric"
    is_signed = dtype == "qint8"
    wf = w.astype(jnp.float32)
    scale, zp = _qparams_from_minmax(
        jnp.min(wf), jnp.max(wf), quant_min=quant_min, quant_max=quant_max,
        symmetric=symmetric, is_signed=is_signed)
    inv_scale = 1.0 / scale
    q = jnp.clip(jnp.round(wf * inv_scale + zp),
                 jnp.float32(quant_min), jnp.float32(quant_max))
    return ((q - zp) * scale).astype(w.dtype)


if __name__ == "__main__":
    key = jax.random.PRNGKey(0)

    def _check(w, **kwargs):
        out = weight_quantizer_forward(w, **kwargs)
        out = jax.block_until_ready(out)
        ref = _reference(w, bit_precision=kwargs.get("bit_precision", 8),
                         dtype=kwargs.get("dtype", "qint8"),
                         method=kwargs.get("method", "per_tensor_symmetric"))
        assert out.shape == w.shape and out.dtype == w.dtype
        assert jnp.allclose(out, ref, atol=1e-6, rtol=1e-6), kwargs

    # 1) Fused single-pass path (Linear-like weight, exact lane-dense reshape).
    w = jax.random.normal(key, (32, 128), dtype=jnp.float32) * 0.1
    for method in ("per_tensor_symmetric", "per_tensor"):
        _check(w, bit_precision=8, dtype="qint8", method=method)

    # 2) Fused path with an awkward shape (exercises edge-padding + slice-back).
    w_odd = jax.random.normal(jax.random.PRNGKey(1), (7, 130),
                              dtype=jnp.float32) * 0.2
    for method in ("per_tensor_symmetric", "per_tensor"):
        _check(w_odd, bit_precision=8, dtype="qint8", method=method)

    # 3) Two-pass path, exact tiling, multi-step grid (partial min/max +
    #    scalar-prefetch params plumbing).
    w2 = jax.random.normal(jax.random.PRNGKey(2), (256, 512),
                           dtype=jnp.float32) * 0.05
    for method in ("per_tensor_symmetric", "per_tensor"):
        _check(w2, bit_precision=8, dtype="qint8", method=method,
               force_two_pass=True, target_block_bytes=64 * 1024)

    # 4) Two-pass path with an awkward shape (row padding, multi-step grid).
    w3 = jax.random.normal(jax.random.PRNGKey(3), (113, 100),
                           dtype=jnp.float32) * 0.05
    for method in ("per_tensor_symmetric", "per_tensor"):
        _check(w3, bit_precision=8, dtype="qint8", method=method,
               force_two_pass=True, target_block_bytes=8 * 1024)

    print("KERNEL_OK")
</pallas_src>

<mosaic_0001>
module attributes {stable_mosaic.version = 11 : i64} {
  func.func @_fused_quant_kernel(%arg0: i32, %arg1: memref<2x2048xf32, #tpu.memory_space<vmem>>, %arg2: memref<2x2048xf32, #tpu.memory_space<vmem>>) attributes {dimension_semantics = [#tpu.dimension_semantics<arbitrary>], iteration_bounds = array<i64: 1>, scalar_prefetch = 0 : i64, scratch_operands = 0 : i64, tpu.core_type = #tpu.core_type<tc>, window_params = [{pipeline_mode = #tpu.pipeline_mode<synchronous>, transform_indices = @transform_0, window_bounds = array<i64: 2, 2048>}, {pipeline_mode = #tpu.pipeline_mode<synchronous>, transform_indices = @transform_1, window_bounds = array<i64: 2, 2048>}]} {
    %c0 = arith.constant 0 : index
    %c0_0 = arith.constant 0 : index
    %0 = vector.load %arg1[%c0, %c0_0] : memref<2x2048xf32, #tpu.memory_space<vmem>>, vector<2x2048xf32>
    %1 = vector.shape_cast %0 : vector<2x2048xf32> to vector<1x2x2048xf32>
    %cst = arith.constant dense<0x7F800000> : vector<1xf32>
    %2 = vector.multi_reduction <minimumf>, %1, %cst [1, 2] : vector<1x2x2048xf32> to vector<1xf32>
    %3 = vector.shape_cast %2 : vector<1xf32> to vector<1x1x1xf32>
    %4 = vector.extract %3[0, 0, 0] : f32 from vector<1x1x1xf32>
    %5 = vector.shape_cast %0 : vector<2x2048xf32> to vector<1x2x2048xf32>
    %cst_1 = arith.constant dense<0xFF800000> : vector<1xf32>
    %6 = vector.multi_reduction <maximumf>, %5, %cst_1 [1, 2] : vector<1x2x2048xf32> to vector<1xf32>
    %7 = vector.shape_cast %6 : vector<1xf32> to vector<1x1x1xf32>
    %8 = vector.extract %7[0, 0, 0] : f32 from vector<1x1x1xf32>
    %cst_2 = arith.constant 0.000000e+00 : f32
    %9 = arith.minimumf %4, %cst_2 : f32
    %cst_3 = arith.constant 0.000000e+00 : f32
    %10 = arith.maximumf %8, %cst_3 : f32
    %cst_4 = arith.constant 0.000000e+00 : f32
    %11 = arith.subf %cst_4, %9 : f32
    %12 = arith.maximumf %11, %10 : f32
    %cst_5 = arith.constant 1.270000e+02 : f32
    %cst_6 = arith.constant -1.270000e+02 : f32
    %13 = arith.subf %cst_5, %cst_6 : f32
    %cst_7 = arith.constant 5.000000e-01 : f32
    %14 = arith.mulf %13, %cst_7 : f32
    %15 = arith.divf %12, %14 : f32
    %cst_8 = arith.constant 1.1920929E-7 : f32
    %16 = arith.maximumf %15, %cst_8 : f32
    %cst_9 = arith.constant 1.000000e+00 : f32
    %17 = arith.divf %cst_9, %16 : f32
    %18 = vector.broadcast %17 : f32 to vector<2x2048xf32>
    %19 = arith.mulf %0, %18 : vector<2x2048xf32>
    %cst_10 = arith.constant 0.000000e+00 : f32
    %20 = vector.broadcast %cst_10 : f32 to vector<2x2048xf32>
    %21 = arith.addf %19, %20 : vector<2x2048xf32>
    %22 = math.roundeven %21 : vector<2x2048xf32>
    %cst_11 = arith.constant -1.270000e+02 : f32
    %cst_12 = arith.constant 1.270000e+02 : f32
    %23 = vector.broadcast %cst_11 : f32 to vector<2x2048xf32>
    %24 = arith.maximumf %23, %22 : vector<2x2048xf32>
    %25 = vector.broadcast %cst_12 : f32 to vector<2x2048xf32>
    %26 = arith.minimumf %25, %24 : vector<2x2048xf32>
    %cst_13 = arith.constant 0.000000e+00 : f32
    %27 = vector.broadcast %cst_13 : f32 to vector<2x2048xf32>
    %28 = arith.subf %26, %27 : vector<2x2048xf32>
    %29 = vector.broadcast %16 : f32 to vector<2x2048xf32>
    %30 = arith.mulf %28, %29 : vector<2x2048xf32>
    %c0_14 = arith.constant 0 : index
    %c0_15 = arith.constant 0 : index
    %31 = vector.load %arg2[%c0_14, %c0_15] : memref<2x2048xf32, #tpu.memory_space<vmem>>, vector<2x2048xf32>
    tpu.vector_store %arg2[%c0_14, %c0_15], %30 {strides = array<i32>} : memref<2x2048xf32, #tpu.memory_space<vmem>>, vector<2x2048xf32>,
    return
  }
  func.func @transform_0(%arg0: i32) -> (i32, i32) {
    %c0_i32 = arith.constant 0 : i32
    %c0_i32_0 = arith.constant 0 : i32
    %c0_i32_1 = arith.constant 0 : i32
    return %c0_i32, %c0_i32_0 : i32, i32
  }
  func.func @transform_1(%arg0: i32) -> (i32, i32) {
    %c0_i32 = arith.constant 0 : i32
    %c0_i32_0 = arith.constant 0 : i32
    %c0_i32_1 = arith.constant 0 : i32
    return %c0_i32, %c0_i32_0 : i32, i32
  }
}

</mosaic_0001>

<llo_original>
// kernel: tpu_custom_call.1
$region0: #{tpu_custom_call.1}
  #allocation0 [shape = 'u32[]', space=smem, size = 0x4, offset = 0x4, fixed_abs, tag = 'smem constant byte address 0x4 - core index']
  #allocation1 [shape = 'u32[144,128]{1,0:T(1,128)}', space=vmem, size = 0x12000, scoped, tag = 'internal scratch']
  %s0 = inlined_call_operand.hbm [shape: f32[2,2048], index: 0, kind: input, shape index: {}]
  %s1 = inlined_call_operand.hbm [shape: f32[2,2048], index: 1, kind: output, shape index: {}]
  %s2 = sld [smem:[#allocation0]]
  $region18: #{tpu_custom_call.1} parent=0
    _
  %s4 = ssub.s32 1, %s2
  %s5 = scalar_select 0, %s4, %s2
  $region1: #{tpu_custom_call.1} parent=0
    #allocation2 [shape = 'u8[16384]{0}', space=vmem, size = 0x4000, scoped, tag = 'input window, operand 0, single buffered']
    #allocation3 [shape = 's32[1]{0}', space=sflag, size = 0x4, scoped, tag = 'scoped memory for tpu_custom_call.1']
    #allocation4 [shape = 's32[1]{0}', space=sflag, size = 0x4, scoped, tag = 'scoped memory for tpu_custom_call.1']
    #allocation5 [shape = 'u8[16384]{0}', space=vmem, size = 0x4000, scoped, tag = 'output window, operand 0, single buffered']
    %6 = vsyncpa [#allocation3], 0
    %7 = vsyncpa [#allocation4], 0
    // Predicated region
    $region2: #{tpu_custom_call.1} parent=1 // pred_check
      _
    $region3: #{tpu_custom_call.1} parent=1 // pred_check_branch
      %9 = sbr.rel (0) target = $region5
    $region4: #{tpu_custom_call.1} parent=1 // pred_region
      %s11 = ssub.s32 512, 512
      %12 = vsyncadd [#allocation3], %s11
      %s14 = sshll.u32 [#allocation2], 4
      %s15 = int_to_ptr.vmem [resolvable:$true] %s14
      %17 = dma.hbm_to_vmem [thread:$0]  %s0, 512, %s15, [#allocation3]
    $region5: #{tpu_custom_call.1} parent=1 // pred_fallthru
      _
    // Predicated region
    $region6: #{tpu_custom_call.1} parent=1 // pred_check
      _
    $region7: #{tpu_custom_call.1} parent=1 // pred_check_branch
      %19 = sbr.rel (0) target = $region9
    $region8: #{tpu_custom_call.1} parent=1 // pred_region
      %20 = dma.done [#allocation3], 512
    $region9: #{tpu_custom_call.1} parent=1 // pred_fallthru
      _
    %v21 = vld [vmem:[#allocation2] sm:$0xff]
    %v22 = vld [vmem:[#allocation2 + $0x8] sm:$0xff]
    %v23 = vld [vmem:[#allocation2 + $0x10] sm:$0xff]
    %v24 = vld [vmem:[#allocation2 + $0x18] sm:$0xff]
    %v29 = vcombine.high %v21, %v21
    %v31 = vunpack.c.l.s4 1983009808
    %v32 = vunpack.c.0.s8 %v31
    %v33 = vlaneseq
    %v34 = vshrl.u32 %v33, 7
    %v35 = vsub.s32 %v32, %v34
    %v36 = vrot.slane %v21, %v35
    %v38 = vunpack.c.l.s4 1983009808
    %v39 = vunpack.c.0.s8 %v38
    %v40 = vlaneseq
    %v41 = vshrl.u32 %v40, 7
    %v42 = vsub.s32 %v39, %v41
    %v43 = vrot.slane %v29, %v42
    %v44 = vcombine.high %v36, %v36
    %v45 = vcombine.high %v43, %v43
    %v46 = vcombine.high %v22, %v22
    %v48 = vunpack.c.l.s4 1983009808
    %v49 = vunpack.c.0.s8 %v48
    %v50 = vlaneseq
    %v51 = vshrl.u32 %v50, 7
    %v52 = vsub.s32 %v49, %v51
    %v53 = vrot.slane %v22, %v52
    %v55 = vunpack.c.l.s4 1983009808
    %v56 = vunpack.c.0.s8 %v55
    %v57 = vlaneseq
    %v58 = vshrl.u32 %v57, 7
    %v59 = vsub.s32 %v56, %v58
    %v60 = vrot.slane %v46, %v59
    %v61 = vcombine.high %v53, %v53
    %v62 = vcombine.high %v60, %v60
    %v63 = vcombine.high %v23, %v23
    %v65 = vunpack.c.l.s4 1983009808
    %v66 = vunpack.c.0.s8 %v65
    %v67 = vlaneseq
    %v68 = vshrl.u32 %v67, 7
    %v69 = vsub.s32 %v66, %v68
    %v70 = vrot.slane %v23, %v69
    %v72 = vunpack.c.l.s4 1983009808
    %v73 = vunpack.c.0.s8 %v72
    %v74 = vlaneseq
    %v75 = vshrl.u32 %v74, 7
    %v76 = vsub.s32 %v73, %v75
    %v77 = vrot.slane %v63, %v76
    %v78 = vcombine.high %v70, %v70
    %v79 = vcombine.high %v77, %v77
    %v80 = vcombine.high %v24, %v24
    %v82 = vunpack.c.l.s4 1983009808
    %v83 = vunpack.c.0.s8 %v82
    %v84 = vlaneseq
    %v85 = vshrl.u32 %v84, 7
    %v86 = vsub.s32 %v83, %v85
    %v87 = vrot.slane %v24, %v86
    %v89 = vunpack.c.l.s4 1983009808
    %v90 = vunpack.c.0.s8 %v89
    %v91 = vlaneseq
    %v92 = vshrl.u32 %v91, 7
    %v93 = vsub.s32 %v90, %v92
    %v94 = vrot.slane %v80, %v93
    %v95 = vcombine.high %v87, %v87
    %v96 = vcombine.high %v94, %v94
    %vm113 = vcmask 1041408
    %v114 = vsel %vm113, %v36, inf
    %v115 = vsel %vm113, %v44, inf
    %v116 = vsel %vm113, %v43, inf
    %v117 = vsel %vm113, %v45, inf
    %v118 = vsel %vm113, %v53, inf
    %v119 = vmin.f32 %v114, %v118
    %v120 = vsel %vm113, %v61, inf
    %v121 = vmin.f32 %v115, %v120
    %v122 = vsel %vm113, %v60, inf
    %v123 = vmin.f32 %v116, %v122
    %v124 = vsel %vm113, %v62, inf
    %v125 = vmin.f32 %v117, %v124
    %v126 = vsel %vm113, %v70, inf
    %v127 = vmin.f32 %v119, %v126
    %v128 = vsel %vm113, %v78, inf
    %v129 = vmin.f32 %v121, %v128
    %v130 = vsel %vm113, %v77, inf
    %v131 = vmin.f32 %v123, %v130
    %v132 = vsel %vm113, %v79, inf
    %v133 = vmin.f32 %v125, %v132
    %v134 = vsel %vm113, %v87, inf
    %v135 = vmin.f32 %v127, %v134
    %v136 = vsel %vm113, %v95, inf
    %v137 = vmin.f32 %v129, %v136
    %v138 = vsel %vm113, %v94, inf
    %v139 = vmin.f32 %v131, %v138
    %v140 = vsel %vm113, %v96, inf
    %v141 = vmin.f32 %v133, %v140
    %v142 = vmin.f32 %v135, %v137
    %v143 = vmin.f32 %v139, %v141
    %v144 = vmin.f32 %v142, %v143
    %145 = vmin.xlane.f32.xlu0 %v144
    %v146 = vpop.xlane.xlu0 %145
    %v147 = vrot.slane %v146, 4
    %v148 = vmin.f32 %v146, %v147
    %v149 = vrot.slane %v148, 2
    %v150 = vmin.f32 %v148, %v149
    %v151 = vrot.slane %v150, 1
    %v152 = vmin.f32 %v150, %v151
    %s153 = vtos %v152
    %v154 = vsel %vm113, %v36, -inf
    %v155 = vsel %vm113, %v44, -inf
    %v156 = vsel %vm113, %v43, -inf
    %v157 = vsel %vm113, %v45, -inf
    %v158 = vsel %vm113, %v53, -inf
    %v159 = vmax.f32 %v154, %v158
    %v160 = vsel %vm113, %v61, -inf
    %v161 = vmax.f32 %v155, %v160
    %v162 = vsel %vm113, %v60, -inf
    %v163 = vmax.f32 %v156, %v162
    %v164 = vsel %vm113, %v62, -inf
    %v165 = vmax.f32 %v157, %v164
    %v166 = vsel %vm113, %v70, -inf
    %v167 = vmax.f32 %v159, %v166
    %v168 = vsel %vm113, %v78, -inf
    %v169 = vmax.f32 %v161, %v168
    %v170 = vsel %vm113, %v77, -inf
    %v171 = vmax.f32 %v163, %v170
    %v172 = vsel %vm113, %v79, -inf
    %v173 = vmax.f32 %v165, %v172
    %v174 = vsel %vm113, %v87, -inf
    %v175 = vmax.f32 %v167, %v174
    %v176 = vsel %vm113, %v95, -inf
    %v177 = vmax.f32 %v169, %v176
    %v178 = vsel %vm113, %v94, -inf
    %v179 = vmax.f32 %v171, %v178
    %v180 = vsel %vm113, %v96, -inf
    %v181 = vmax.f32 %v173, %v180
    %v182 = vmax.f32 %v175, %v177
    %v183 = vmax.f32 %v179, %v181
    %v184 = vmax.f32 %v182, %v183
    %185 = vmax.xlane.f32.xlu0 %v184
    %v186 = vpop.xlane.xlu0 %185
    %v187 = vrot.slane %v186, 4
    %v188 = vmax.f32 %v186, %v187
    %v189 = vrot.slane %v188, 2
    %v190 = vmax.f32 %v188, %v189
    %v191 = vrot.slane %v190, 1
    %v192 = vmax.f32 %v190, %v191
    %s193 = vtos %v192
    %s194 = smin.f32 %s153, 0.0
    %s195 = smax.f32 %s193, 0.0
    %s196 = ssub.f32 0.0, %s194
    %s197 = smax.f32 %s196, %s195
    %v198 = vrcp.pop 127.0
    %s199 = vtos %v198
    %s200 = smul.f32 %s197, %s199
    %s201 = smax.f32 %s200, 1.1920929e-07
    %v202 = vstv %s201
    %v203 = vrcp.pop %v202
    %s204 = vtos %v203
    %v205 = vstv %s204
    %v206 = vmul.f32 %v21, %v205
    %v207 = vmul.f32 %v22, %v205
    %v208 = vmul.f32 %v23, %v205
    %v209 = vmul.f32 %v24, %v205
    %v210 = vadd.f32 %v206, 0.0
    %v211 = vadd.f32 %v207, 0.0
    %v212 = vadd.f32 %v208, 0.0
    %v213 = vadd.f32 %v209, 0.0
    %v214 = vround.ne.pseudo %v210
    %v215 = vround.ne.pseudo %v211
    %v216 = vround.ne.pseudo %v212
    %v217 = vround.ne.pseudo %v213
    %v218 = vmax.f32 %v214, -127.0
    %v219 = vmax.f32 %v215, -127.0
    %v220 = vmax.f32 %v216, -127.0
    %v221 = vmax.f32 %v217, -127.0
    %v222 = vmin.f32 %v218, 127.0
    %v223 = vmin.f32 %v219, 127.0
    %v224 = vmin.f32 %v220, 127.0
    %v225 = vmin.f32 %v221, 127.0
    %v226 = vstv %s201
    %v227 = vmul.f32 %v222, %v226
    %v228 = vmul.f32 %v223, %v226
    %v229 = vmul.f32 %v224, %v226
    %v230 = vmul.f32 %v225, %v226
    %231 = vst [vmem:[#allocation5] sm:$0xff] %v227
    %232 = vst [vmem:[#allocation5 + $0x8] sm:$0xff] %v228
    %233 = vst [vmem:[#allocation5 + $0x10] sm:$0xff] %v229
    %234 = vst [vmem:[#allocation5 + $0x18] sm:$0xff] %v230
    // Predicated region
    $region10: #{tpu_custom_call.1} parent=1 // pred_check
      _
    $region11: #{tpu_custom_call.1} parent=1 // pred_check_branch
      %236 = sbr.rel (0) target = $region13
    $region12: #{tpu_custom_call.1} parent=1 // pred_region
      %s238 = ssub.s32 512, 512
      %239 = vsyncadd [#allocation4], %s238
      %s241 = sshll.u32 [#allocation5], 4
      %s242 = int_to_ptr.vmem [resolvable:$true] %s241
      %244 = dma.vmem_to_hbm [thread:$0]  %s242, 512, %s1, [#allocation4]
    $region13: #{tpu_custom_call.1} parent=1 // pred_fallthru
      _
    // Predicated region
    $region14: #{tpu_custom_call.1} parent=1 // pred_check
      _
    $region15: #{tpu_custom_call.1} parent=1 // pred_check_branch
      %246 = sbr.rel (0) target = $region17
    $region16: #{tpu_custom_call.1} parent=1 // pred_region
      %247 = dma.done [#allocation4], 512
    $region17: #{tpu_custom_call.1} parent=1 // pred_fallthru
      _
    %248 = vsyncpa [#allocation3], 1
    %249 = vsyncpa [#allocation4], 1

</llo_original>
